<compile_context>
chip_gen: v7x
topology: tpu7x:2x2x1
jax: 0.10.0
libtpu: 0.0.40
codegen_flags: <defaults>
</compile_context>

<pallas_src>
import functools
import math

import jax
import jax.numpy as jnp
from jax.experimental import pallas as pl
from jax.experimental.pallas import tpu as pltpu


# ----------------------------- Pallas kernel -------------------------------


def _encoder_fused_kernel(a_ref, x_ref, w_ref, b_ref, o_ref, *, out_channels):
    """Fused: 2x (GCN + ReLU) -> GCN -> row-wise L1 normalize.

    a_ref : bf16 [N, N]      normalized adjacency A_hat
    x_ref : bf16 [N, P]      node features, zero-padded to width P
    w_ref : bf16 [3, P, P]   weight slab (each layer zero-padded to [P, P])
    b_ref : f32  [3, 1, P]   bias slab (zero-padded)
    o_ref : f32  [N, out_channels]

    All intermediates stay in VMEM/vregs; MXU runs bf16 with f32 accumulation,
    bias / ReLU / normalize stay in f32 on the VPU/EUP/XLU.
    """
    a = a_ref[...]                              # bf16 [N, N]
    h = x_ref[...]                              # bf16 [N, P]
    num_layers = w_ref.shape[0]                 # 3, static unroll

    for layer in range(num_layers):
        # Zero padding of x / W / b makes every layer a uniform [*, P] matmul
        # pair; padded lanes stay exactly zero through bias + ReLU.
        hw = jnp.dot(h, w_ref[layer], preferred_element_type=jnp.float32)       # [N, P]
        h = jnp.dot(a, hw.astype(jnp.bfloat16), preferred_element_type=jnp.float32)
        h = h + b_ref[layer]                    # f32 broadcast [1, P]
        if layer < num_layers - 1:
            h = jnp.maximum(h, 0.0)             # ReLU (the Encoder activation)
            h = h.astype(jnp.bfloat16)          # back to MXU-native for next layer

    # F.normalize(x, p=1, dim=1, eps=1e-12).  Padded columns are exactly zero,
    # so slicing before the reduction is equivalent to the unpadded compute.
    h = h[:, :out_channels]                                       # f32 [N, OUT]
    denom = jnp.maximum(jnp.sum(jnp.abs(h), axis=1, keepdims=True), 1e-12)
    # EUP reciprocal (approx); exact-to-1.0 row sums are not required here.
    o_ref[...] = (h * pl.reciprocal(denom, approx=True)).astype(o_ref.dtype)
    # TODO(synk): for large N, emit a lane-dense (>=128-wide) output slab and
    # slice in the wrapper to avoid 16/128-lane masked stores.


def encoder_fused(a_hat_bf16, x, params):
    """Single no-grid pallas_call running the whole Encoder forward in VMEM."""
    n, in_c = x.shape
    hid = params["conv_1"]["w"].shape[1]
    out_c = params["conv_last"]["w"].shape[1]
    p = max(in_c, hid, out_c)                   # uniform padded channel width

    def pad_w(w):
        return jnp.pad(w, ((0, p - w.shape[0]), (0, p - w.shape[1])))

    # Consolidated small operands (4 inputs total instead of 8).
    w_slab = jnp.stack([pad_w(params["conv_1"]["w"]),
                        pad_w(params["conv_2"]["w"]),
                        pad_w(params["conv_last"]["w"])]).astype(jnp.bfloat16)
    b_slab = jnp.stack([
        jnp.pad(params["conv_1"]["b"], (0, p - params["conv_1"]["b"].shape[0])),
        jnp.pad(params["conv_2"]["b"], (0, p - params["conv_2"]["b"].shape[0])),
        jnp.pad(params["conv_last"]["b"], (0, p - params["conv_last"]["b"].shape[0])),
    ]).astype(jnp.float32).reshape(3, 1, p)
    x_pad = jnp.pad(x, ((0, 0), (0, p - in_c))).astype(jnp.bfloat16)

    kernel = functools.partial(_encoder_fused_kernel, out_channels=out_c)
    vmem_spec = pl.BlockSpec(memory_space=pltpu.MemorySpace.VMEM)

    # No grid: one kernel invocation, every operand is a single (non-double-
    # buffered) whole-array VMEM buffer.  VMEM limit left at the per-chip
    # scoped default (toy footprint is a few KiB).
    return pl.pallas_call(
        kernel,
        out_shape=jax.ShapeDtypeStruct((n, out_c), jnp.float32),
        in_specs=[vmem_spec, vmem_spec, vmem_spec, vmem_spec],
        out_specs=vmem_spec,
    )(a_hat_bf16, x_pad, w_slab, b_slab)


# ------------------------------- glue (JAX) --------------------------------


def _build_a_hat_f32(edge_index, num_nodes):
    """Dense normalized adjacency matching GCNConv.norm() + propagate(add)."""
    # TODO(synk): for large graphs, skip the dense O(N^2) A_hat and use
    # scalar-prefetch (row offsets / CSR) with in-kernel gather instead.
    row, col = edge_index[0], edge_index[1]
    ew = jnp.ones(row.shape[0], dtype=jnp.float32)
    sl = jnp.arange(num_nodes, dtype=edge_index.dtype)
    row = jnp.concatenate([row, sl])
    col = jnp.concatenate([col, sl])
    ew = jnp.concatenate([ew, jnp.ones(num_nodes, dtype=jnp.float32)])

    deg = jnp.zeros((num_nodes,), dtype=jnp.float32).at[row].add(ew)
    deg_inv_sqrt = jnp.where(deg > 0, jax.lax.rsqrt(deg), 0.0)
    norm = deg_inv_sqrt[row] * ew * deg_inv_sqrt[col]

    a_hat = jnp.zeros((num_nodes, num_nodes), dtype=jnp.float32)
    a_hat = a_hat.at[col, row].add(norm)        # aggregate at the target node
    return a_hat


def build_a_hat(edge_index, num_nodes):
    # Scatter in f32, convert at the producer: the bf16 cast fuses with A_hat's
    # construction (no standalone extra HBM pass over the dominant N^2 array).
    return _build_a_hat_f32(edge_index, num_nodes).astype(jnp.bfloat16)


def glorot_init(key, fan_in, fan_out):
    stdv = math.sqrt(6.0 / (fan_in + fan_out))
    return jax.random.uniform(
        key, (fan_in, fan_out), dtype=jnp.float32, minval=-stdv, maxval=stdv
    )


def init_encoder_params(key, in_channels, hidden_channels, out_channels):
    """conv_1 (in->hid), conv_2 (hid->hid), conv_last (hid->out); zero biases."""
    k1, k2, k3 = jax.random.split(key, 3)
    return {
        "conv_1": {"w": glorot_init(k1, in_channels, hidden_channels),
                   "b": jnp.zeros((hidden_channels,), jnp.float32)},
        "conv_2": {"w": glorot_init(k2, hidden_channels, hidden_channels),
                   "b": jnp.zeros((hidden_channels,), jnp.float32)},
        "conv_last": {"w": glorot_init(k3, hidden_channels, out_channels),
                      "b": jnp.zeros((out_channels,), jnp.float32)},
    }


@jax.jit
def encoder_forward(params, x, edge_index):
    """Mirrors Encoder.forward with k=2 and activation=ReLU (one fused kernel)."""
    num_nodes = x.shape[0]
    a_hat = build_a_hat(edge_index, num_nodes)
    return encoder_fused(a_hat, x, params)


@jax.jit
def encoder_reference(params, x, edge_index):
    """Pure-JAX f32 reference of the same forward pass (for validation)."""
    a_hat = _build_a_hat_f32(edge_index, x.shape[0])
    h = x
    for name, act in (("conv_1", True), ("conv_2", True), ("conv_last", False)):
        h = a_hat @ (h @ params[name]["w"]) + params[name]["b"]
        if act:
            h = jnp.maximum(h, 0.0)
    denom = jnp.maximum(jnp.sum(jnp.abs(h), axis=1, keepdims=True), 1e-12)
    return h / denom


# ---------------------------------- main -----------------------------------


if __name__ == "__main__":
    N = 16            # nodes
    E = 40            # edges (no self-loops)
    IN_C = 8
    HID_C = 32
    OUT_C = 16

    key = jax.random.PRNGKey(0)
    k_x, k_e, k_p = jax.random.split(key, 3)

    x = jax.random.normal(k_x, (N, IN_C), dtype=jnp.float32)

    # random directed edges, guaranteed no self-loops
    src = jax.random.randint(k_e, (E,), 0, N, dtype=jnp.int32)
    dst = (src + jax.random.randint(jax.random.fold_in(k_e, 1), (E,), 1, N,
                                    dtype=jnp.int32)) % N
    edge_index = jnp.stack([src, dst], axis=0)

    params = init_encoder_params(k_p, IN_C, HID_C, OUT_C)

    out = encoder_forward(params, x, edge_index)
    out = jax.block_until_ready(out)
    ref = jax.block_until_ready(encoder_reference(params, x, edge_index))

    assert out.shape == (N, OUT_C)
    assert bool(jnp.all(jnp.isfinite(out)))
    # rows of a p=1-normalized matrix have |row|_1 ~= 1 (bf16 + approx recip)
    row_l1 = jnp.sum(jnp.abs(out), axis=1)
    assert bool(jnp.all(jnp.abs(row_l1 - 1.0) < 2e-2))
    # bf16 MXU + approx reciprocal vs f32 reference
    max_err = float(jnp.max(jnp.abs(out - ref)))
    assert max_err < 2e-2, f"max |kernel - f32 ref| = {max_err}"
    print("KERNEL_OK")
</pallas_src>

<mosaic_0001>
module attributes {stable_mosaic.version = 11 : i64} {
  func.func @_encoder_fused_kernel(%arg0: memref<16x16xbf16, #tpu.memory_space<vmem>>, %arg1: memref<16x32xbf16, #tpu.memory_space<vmem>>, %arg2: memref<3x32x32xbf16, #tpu.memory_space<vmem>>, %arg3: memref<3x1x32xf32, #tpu.memory_space<vmem>>, %arg4: memref<16x16xf32, #tpu.memory_space<vmem>>) attributes {dimension_semantics = [], scalar_prefetch = 0 : i64, scratch_operands = 0 : i64, tpu.core_type = #tpu.core_type<tc>} {
    %c0 = arith.constant 0 : index
    %c0_0 = arith.constant 0 : index
    %0 = vector.load %arg0[%c0, %c0_0] : memref<16x16xbf16, #tpu.memory_space<vmem>>, vector<16x16xbf16>
    %c0_1 = arith.constant 0 : index
    %c0_2 = arith.constant 0 : index
    %1 = vector.load %arg1[%c0_1, %c0_2] : memref<16x32xbf16, #tpu.memory_space<vmem>>, vector<16x32xbf16>
    %c0_3 = arith.constant 0 : index
    %c0_4 = arith.constant 0 : index
    %c0_5 = arith.constant 0 : index
    %2 = vector.load %arg2[%c0_3, %c0_4, %c0_5] : memref<3x32x32xbf16, #tpu.memory_space<vmem>>, vector<1x32x32xbf16>
    %3 = vector.shape_cast %2 : vector<1x32x32xbf16> to vector<32x32xbf16>
    %cst = arith.constant dense<0.000000e+00> : vector<16x32xf32>
    %4 = tpu.matmul %1, %3, %cst {dimension_numbers = #tpu.dot_dimension_numbers<[1], [0], [0], [1], [0, 0, 1, 1], [], []>} : vector<16x32xbf16>, vector<32x32xbf16>, vector<16x32xf32> -> vector<16x32xf32>
    %5 = arith.truncf %4 : vector<16x32xf32> to vector<16x32xbf16>
    %cst_6 = arith.constant dense<0.000000e+00> : vector<16x32xf32>
    %6 = tpu.matmul %0, %5, %cst_6 {dimension_numbers = #tpu.dot_dimension_numbers<[1], [0], [0], [1], [0, 0, 1, 1], [], []>} : vector<16x16xbf16>, vector<16x32xbf16>, vector<16x32xf32> -> vector<16x32xf32>
    %c0_7 = arith.constant 0 : index
    %c0_8 = arith.constant 0 : index
    %c0_9 = arith.constant 0 : index
    %7 = vector.load %arg3[%c0_7, %c0_8, %c0_9] : memref<3x1x32xf32, #tpu.memory_space<vmem>>, vector<1x1x32xf32>
    %8 = vector.shape_cast %7 : vector<1x1x32xf32> to vector<1x32xf32>
    %9 = vector.broadcast %8 : vector<1x32xf32> to vector<16x32xf32>
    %10 = arith.addf %6, %9 : vector<16x32xf32>
    %cst_10 = arith.constant 0.000000e+00 : f32
    %11 = vector.broadcast %cst_10 : f32 to vector<16x32xf32>
    %12 = arith.maximumf %10, %11 : vector<16x32xf32>
    %13 = arith.truncf %12 : vector<16x32xf32> to vector<16x32xbf16>
    %c1 = arith.constant 1 : index
    %c0_11 = arith.constant 0 : index
    %c0_12 = arith.constant 0 : index
    %14 = vector.load %arg2[%c1, %c0_11, %c0_12] : memref<3x32x32xbf16, #tpu.memory_space<vmem>>, vector<1x32x32xbf16>
    %15 = vector.shape_cast %14 : vector<1x32x32xbf16> to vector<32x32xbf16>
    %cst_13 = arith.constant dense<0.000000e+00> : vector<16x32xf32>
    %16 = tpu.matmul %13, %15, %cst_13 {dimension_numbers = #tpu.dot_dimension_numbers<[1], [0], [0], [1], [0, 0, 1, 1], [], []>} : vector<16x32xbf16>, vector<32x32xbf16>, vector<16x32xf32> -> vector<16x32xf32>
    %17 = arith.truncf %16 : vector<16x32xf32> to vector<16x32xbf16>
    %cst_14 = arith.constant dense<0.000000e+00> : vector<16x32xf32>
    %18 = tpu.matmul %0, %17, %cst_14 {dimension_numbers = #tpu.dot_dimension_numbers<[1], [0], [0], [1], [0, 0, 1, 1], [], []>} : vector<16x16xbf16>, vector<16x32xbf16>, vector<16x32xf32> -> vector<16x32xf32>
    %c1_15 = arith.constant 1 : index
    %c0_16 = arith.constant 0 : index
    %c0_17 = arith.constant 0 : index
    %19 = vector.load %arg3[%c1_15, %c0_16, %c0_17] : memref<3x1x32xf32, #tpu.memory_space<vmem>>, vector<1x1x32xf32>
    %20 = vector.shape_cast %19 : vector<1x1x32xf32> to vector<1x32xf32>
    %21 = vector.broadcast %20 : vector<1x32xf32> to vector<16x32xf32>
    %22 = arith.addf %18, %21 : vector<16x32xf32>
    %cst_18 = arith.constant 0.000000e+00 : f32
    %23 = vector.broadcast %cst_18 : f32 to vector<16x32xf32>
    %24 = arith.maximumf %22, %23 : vector<16x32xf32>
    %25 = arith.truncf %24 : vector<16x32xf32> to vector<16x32xbf16>
    %c2 = arith.constant 2 : index
    %c0_19 = arith.constant 0 : index
    %c0_20 = arith.constant 0 : index
    %26 = vector.load %arg2[%c2, %c0_19, %c0_20] : memref<3x32x32xbf16, #tpu.memory_space<vmem>>, vector<1x32x32xbf16>
    %27 = vector.shape_cast %26 : vector<1x32x32xbf16> to vector<32x32xbf16>
    %cst_21 = arith.constant dense<0.000000e+00> : vector<16x32xf32>
    %28 = tpu.matmul %25, %27, %cst_21 {dimension_numbers = #tpu.dot_dimension_numbers<[1], [0], [0], [1], [0, 0, 1, 1], [], []>} : vector<16x32xbf16>, vector<32x32xbf16>, vector<16x32xf32> -> vector<16x32xf32>
    %29 = arith.truncf %28 : vector<16x32xf32> to vector<16x32xbf16>
    %cst_22 = arith.constant dense<0.000000e+00> : vector<16x32xf32>
    %30 = tpu.matmul %0, %29, %cst_22 {dimension_numbers = #tpu.dot_dimension_numbers<[1], [0], [0], [1], [0, 0, 1, 1], [], []>} : vector<16x16xbf16>, vector<16x32xbf16>, vector<16x32xf32> -> vector<16x32xf32>
    %c2_23 = arith.constant 2 : index
    %c0_24 = arith.constant 0 : index
    %c0_25 = arith.constant 0 : index
    %31 = vector.load %arg3[%c2_23, %c0_24, %c0_25] : memref<3x1x32xf32, #tpu.memory_space<vmem>>, vector<1x1x32xf32>
    %32 = vector.shape_cast %31 : vector<1x1x32xf32> to vector<1x32xf32>
    %33 = vector.broadcast %32 : vector<1x32xf32> to vector<16x32xf32>
    %34 = arith.addf %30, %33 : vector<16x32xf32>
    %35 = vector.extract_strided_slice %34 {offsets = [0, 0], sizes = [16, 16], strides = [1, 1]} : vector<16x32xf32> to vector<16x16xf32>
    %36 = math.absf %35 : vector<16x16xf32>
    %cst_26 = arith.constant dense<0.000000e+00> : vector<16xf32>
    %37 = vector.multi_reduction <add>, %36, %cst_26 [1] : vector<16x16xf32> to vector<16xf32>
    %38 = vector.shape_cast %37 : vector<16xf32> to vector<16x1xf32>
    %cst_27 = arith.constant 9.99999996E-13 : f32
    %39 = vector.broadcast %cst_27 : f32 to vector<16x1xf32>
    %40 = arith.maximumf %38, %39 : vector<16x1xf32>
    %41 = tpu.reciprocal %40 {approx = true} : vector<16x1xf32> -> vector<16x1xf32>
    %42 = vector.broadcast %41 : vector<16x1xf32> to vector<16x16xf32>
    %43 = arith.mulf %35, %42 : vector<16x16xf32>
    %c0_28 = arith.constant 0 : index
    %c0_29 = arith.constant 0 : index
    %44 = vector.load %arg4[%c0_28, %c0_29] : memref<16x16xf32, #tpu.memory_space<vmem>>, vector<16x16xf32>
    tpu.vector_store %arg4[%c0_28, %c0_29], %43 {strides = array<i32>} : memref<16x16xf32, #tpu.memory_space<vmem>>, vector<16x16xf32>,
    return
  }
}

</mosaic_0001>

<llo_original>
// kernel: mul.1
$region0: #{mul.1}
  #allocation0 [shape = 's32[1]{0}', space=sflag, size = 0x4, scoped, tag = 'scoped memory for mul.1']
  %s0 = inlined_call_operand.vmem [shape: f32[56], index: 0, kind: input, shape index: {}]
  %s1 = inlined_call_operand.vmem [shape: f32[56], index: 1, kind: input, shape index: {}]
  %s2 = inlined_call_operand.vmem [shape: f32[56], index: 2, kind: output, shape index: {}]
  %v3 = vld [vmem:[%s0] sm:$0x1]
  %v4 = vld [vmem:[%s1] sm:$0x1]
  %5 = xla_tuple %v3, %v4
  %6 = xla_tuple %5
  %v7 = vmul.f32 %v3, %v4
  %8 = xla_tuple %v7
  %9 = vst [vmem:[%s2] sm:$0x1] %v7

// kernel: encoder_forward.1
$region0: #{encoder_forward.1}
  #allocation0 [shape = 'u32[]', space=smem, size = 0x4, offset = 0x4, fixed_abs, tag = 'smem constant byte address 0x4 - core index']
  #allocation1 [shape = 'u32[144,128]{1,0:T(1,128)}', space=vmem, size = 0x12000, scoped, tag = 'internal scratch']
  %s0 = inlined_call_operand.vmem [shape: bf16[16,16], index: 0, kind: input, shape index: {}]
  %s1 = inlined_call_operand.vmem [shape: bf16[16,32], index: 1, kind: input, shape index: {}]
  %s2 = inlined_call_operand.vmem [shape: bf16[3,32,32], index: 2, kind: input, shape index: {}]
  %s3 = inlined_call_operand.vmem [shape: f32[3,1,32], index: 3, kind: input, shape index: {}]
  %s4 = inlined_call_operand.hbm [shape: f32[16,16], index: 4, kind: output, shape index: {}]
  %s5 = sld [smem:[#allocation0]]
  $region26: #{encoder_forward.1} parent=0
    _
  %s7 = ssub.s32 1, %s5
  %s8 = scalar_select 0, %s7, %s5
  $region1: #{encoder_forward.1} parent=0
    #allocation2 [shape = 'u8[8192]{0}', space=vmem, size = 0x2000, scoped, tag = 'output window, operand 0, single buffered']
    #allocation3 [shape = 's32[1]{0}', space=sflag, size = 0x4, scoped, tag = 'scoped memory for encoder_forward.1']
    %9 = vsyncpa [#allocation3], 0
    // Predicated region
    $region2: #{encoder_forward.1} parent=1 // pred_check
      _
    $region3: #{encoder_forward.1} parent=1 // pred_check_branch
      %11 = sbr.rel (0) target = $region5
    $region4: #{encoder_forward.1} parent=1 // pred_region
      _
    $region5: #{encoder_forward.1} parent=1 // pred_fallthru
      _
    // Predicated region
    $region6: #{encoder_forward.1} parent=1 // pred_check
      _
    $region7: #{encoder_forward.1} parent=1 // pred_check_branch
      %13 = sbr.rel (0) target = $region9
    $region8: #{encoder_forward.1} parent=1 // pred_region
      _
    $region9: #{encoder_forward.1} parent=1 // pred_fallthru
      _
    // Predicated region
    $region10: #{encoder_forward.1} parent=1 // pred_check
      _
    $region11: #{encoder_forward.1} parent=1 // pred_check_branch
      %15 = sbr.rel (0) target = $region13
    $region12: #{encoder_forward.1} parent=1 // pred_region
      _
    $region13: #{encoder_forward.1} parent=1 // pred_fallthru
      _
    // Predicated region
    $region14: #{encoder_forward.1} parent=1 // pred_check
      _
    $region15: #{encoder_forward.1} parent=1 // pred_check_branch
      %17 = sbr.rel (0) target = $region17
    $region16: #{encoder_forward.1} parent=1 // pred_region
      _
    $region17: #{encoder_forward.1} parent=1 // pred_fallthru
      _
    %v19 = vld [vmem:[%s0] sm:$0xf]
    %v20 = vld [vmem:[%s0 + $0x4] sm:$0xf]
    %v21 = vld [vmem:[%s1] sm:$0xf]
    %v22 = vld [vmem:[%s1 + $0x4] sm:$0xf]
    %v23 = vld [vmem:[%s2] sm:$0xf]
    %v24 = vld [vmem:[%s2 + $0x4] sm:$0xf]
    %v25 = vld [vmem:[%s2 + $0x8] sm:$0xf]
    %v26 = vld [vmem:[%s2 + $0xc] sm:$0xf]
    %v29 = vunpack.c.l.b16 %v21
    %v30 = vunpack.c.l.b16 %v22
    %v31 = vpack.c.b16 %v30, %v29
    %v36 = vunpack.c.l.b16 %v23
    %v37 = vunpack.c.l.b16 %v24
    %v38 = vunpack.c.l.b16 %v25
    %v39 = vunpack.c.l.b16 %v26
    %v40 = vpack.c.b16 %v37, %v36
    %v41 = vpack.c.b16 %v39, %v38
    %vm44 = vcmask 261120
    %v46 = vsel %vm44, %v31, 0
    %48 = vmatprep.subr.bf16.mxu0 0
    %49 = vmatpush1.bf16.msra.mxu0 %v40
    %50 = vmatprep.subr.bf16.mxu0 0
    %51 = vmatpush1.bf16.msra.mxu0 %v41
    %52 = vmatprep.subr.bf16.mxu0 0
    %53 = vmatpush1.bf16.msra.mxu0 0
    %54 = vmatprep.subr.bf16.mxu0 0
    %55 = vmatpush1.bf16.msra.mxu0 0
    %56 = vmatprep.subr.bf16.mxu0 0
    %57 = vmatpush1.bf16.msra.mxu0 0
    %58 = vmatprep.subr.bf16.mxu0 0
    %59 = vmatpush1.bf16.msra.mxu0 0
    %60 = vmatprep.subr.bf16.mxu0 0
    %61 = vmatpush1.bf16.msra.mxu0 0
    %62 = vmatprep.subr.bf16.mxu0 0
    %63 = vmatpush1.bf16.msra.mxu0 0
    %64 = vmatprep.subr.bf16.mxu0 0
    %65 = vmatpush1.bf16.msra.mxu0 0
    %66 = vmatprep.subr.bf16.mxu0 0
    %67 = vmatpush1.bf16.msra.mxu0 0
    %68 = vmatprep.subr.bf16.mxu0 0
    %69 = vmatpush1.bf16.msra.mxu0 0
    %70 = vmatprep.subr.bf16.mxu0 0
    %71 = vmatpush1.bf16.msra.mxu0 0
    %72 = vmatprep.subr.bf16.mxu0 0
    %73 = vmatpush1.bf16.msra.mxu0 0
    %74 = vmatprep.subr.bf16.mxu0 0
    %75 = vmatpush1.bf16.msra.mxu0 0
    %76 = vmatprep.subr.bf16.mxu0 0
    %77 = vmatpush1.bf16.msra.mxu0 0
    %78 = vmatprep.subr.bf16.mxu0 0
    %79 = vmatpush1.bf16.msra.mxu0 0
    %80 = vmatprep.mubr.bf16.mxu0 0
    %81 = vmatmul.mubr.bf16.gmra.mrb[0].mxu0 %v46
    %v82 = vpop.f32.mrb[0].mxu0
    %v83 = vadd.f32 0.0, %v82
    %v84 = vpop.f32.mrb[0].mxu0
    %v85 = vpop.f32.mrb[0].mxu0
    %v86 = vadd.f32 0.0, %v85
    %v87 = vpop.f32.mrb[0].mxu0
    %88 = vdwg.mxu0
    %v89 = vpack.c.bf16 %v86, %v83
    %v90 = vld [vmem:[%s3] sm:$0x1]
    %v92 = vlaneseq
    %v93 = vshrl.u32 %v92, 7
    %v94 = vsub.s32 0, %v93
    %v95 = vrot.slane %v90, %v94
    %v99 = vunpack.c.l.b16 %v19
    %v100 = vunpack.c.l.b16 %v20
    %v101 = vpack.c.b16 %v100, %v99
    %vm102 = vcmask 130048
    %v104 = vsel %vm102, %v101, 0
    %106 = vmatprep.subr.bf16.mxu0 0
    %107 = vmatpush1.bf16.msra.mxu0 %v89
    %108 = vmatprep.subr.bf16.mxu0 0
    %109 = vmatpush1.bf16.msra.mxu0 0
    %110 = vmatprep.subr.bf16.mxu0 0
    %111 = vmatpush1.bf16.msra.mxu0 0
    %112 = vmatprep.subr.bf16.mxu0 0
    %113 = vmatpush1.bf16.msra.mxu0 0
    %114 = vmatprep.subr.bf16.mxu0 0
    %115 = vmatpush1.bf16.msra.mxu0 0
    %116 = vmatprep.subr.bf16.mxu0 0
    %117 = vmatpush1.bf16.msra.mxu0 0
    %118 = vmatprep.subr.bf16.mxu0 0
    %119 = vmatpush1.bf16.msra.mxu0 0
    %120 = vmatprep.subr.bf16.mxu0 0
    %121 = vmatpush1.bf16.msra.mxu0 0
    %122 = vmatprep.subr.bf16.mxu0 0
    %123 = vmatpush1.bf16.msra.mxu0 0
    %124 = vmatprep.subr.bf16.mxu0 0
    %125 = vmatpush1.bf16.msra.mxu0 0
    %126 = vmatprep.subr.bf16.mxu0 0
    %127 = vmatpush1.bf16.msra.mxu0 0
    %128 = vmatprep.subr.bf16.mxu0 0
    %129 = vmatpush1.bf16.msra.mxu0 0
    %130 = vmatprep.subr.bf16.mxu0 0
    %131 = vmatpush1.bf16.msra.mxu0 0
    %132 = vmatprep.subr.bf16.mxu0 0
    %133 = vmatpush1.bf16.msra.mxu0 0
    %134 = vmatprep.subr.bf16.mxu0 0
    %135 = vmatpush1.bf16.msra.mxu0 0
    %136 = vmatprep.subr.bf16.mxu0 0
    %137 = vmatpush1.bf16.msra.mxu0 0
    %138 = vmatprep.mubr.bf16.mxu0 0
    %139 = vmatmul.mubr.bf16.gmra.mrb[0].mxu0 %v104
    %v140 = vpop.f32.mrb[0].mxu0
    %v141 = vadd.f32 %v95, %v140
    %v142 = vpop.f32.mrb[0].mxu0
    %v143 = vpop.f32.mrb[0].mxu0
    %v144 = vadd.f32 %v95, %v143
    %v145 = vpop.f32.mrb[0].mxu0
    %146 = vdwg.mxu0
    %v147 = vmax.f32 %v141, 0.0
    %v148 = vmax.f32 %v144, 0.0
    %v149 = vpack.c.bf16 %v148, %v147
    %s150 = scalar_lea.vmem %s2, 16
    %v151 = vld [vmem:[%s150] sm:$0xf]
    %v152 = vld [vmem:[%s150 + $0x4] sm:$0xf]
    %v153 = vld [vmem:[%s150 + $0x8] sm:$0xf]
    %v154 = vld [vmem:[%s150 + $0xc] sm:$0xf]
    %v159 = vunpack.c.l.b16 %v151
    %v160 = vunpack.c.l.b16 %v152
    %v161 = vunpack.c.l.b16 %v153
    %v162 = vunpack.c.l.b16 %v154
    %v163 = vpack.c.b16 %v160, %v159
    %v164 = vpack.c.b16 %v162, %v161
    %v168 = vsel %vm44, %v149, 0
    %170 = vmatprep.subr.bf16.mxu0 0
    %171 = vmatpush1.bf16.msra.mxu0 %v163
    %172 = vmatprep.subr.bf16.mxu0 0
    %173 = vmatpush1.bf16.msra.mxu0 %v164
    %174 = vmatprep.subr.bf16.mxu0 0
    %175 = vmatpush1.bf16.msra.mxu0 0
    %176 = vmatprep.subr.bf16.mxu0 0
    %177 = vmatpush1.bf16.msra.mxu0 0
    %178 = vmatprep.subr.bf16.mxu0 0
    %179 = vmatpush1.bf16.msra.mxu0 0
    %180 = vmatprep.subr.bf16.mxu0 0
    %181 = vmatpush1.bf16.msra.mxu0 0
    %182 = vmatprep.subr.bf16.mxu0 0
    %183 = vmatpush1.bf16.msra.mxu0 0
    %184 = vmatprep.subr.bf16.mxu0 0
    %185 = vmatpush1.bf16.msra.mxu0 0
    %186 = vmatprep.subr.bf16.mxu0 0
    %187 = vmatpush1.bf16.msra.mxu0 0
    %188 = vmatprep.subr.bf16.mxu0 0
    %189 = vmatpush1.bf16.msra.mxu0 0
    %190 = vmatprep.subr.bf16.mxu0 0
    %191 = vmatpush1.bf16.msra.mxu0 0
    %192 = vmatprep.subr.bf16.mxu0 0
    %193 = vmatpush1.bf16.msra.mxu0 0
    %194 = vmatprep.subr.bf16.mxu0 0
    %195 = vmatpush1.bf16.msra.mxu0 0
    %196 = vmatprep.subr.bf16.mxu0 0
    %197 = vmatpush1.bf16.msra.mxu0 0
    %198 = vmatprep.subr.bf16.mxu0 0
    %199 = vmatpush1.bf16.msra.mxu0 0
    %200 = vmatprep.subr.bf16.mxu0 0
    %201 = vmatpush1.bf16.msra.mxu0 0
    %202 = vmatprep.mubr.bf16.mxu0 0
    %203 = vmatmul.mubr.bf16.gmra.mrb[0].mxu0 %v168
    %v204 = vpop.f32.mrb[0].mxu0
    %v205 = vadd.f32 0.0, %v204
    %v206 = vpop.f32.mrb[0].mxu0
    %v207 = vpop.f32.mrb[0].mxu0
    %v208 = vadd.f32 0.0, %v207
    %v209 = vpop.f32.mrb[0].mxu0
    %210 = vdwg.mxu0
    %v211 = vpack.c.bf16 %v208, %v205
    %s212 = scalar_lea.vmem %s3, 1
    %v213 = vld [vmem:[%s212] sm:$0x1]
    %v215 = vlaneseq
    %v216 = vshrl.u32 %v215, 7
    %v217 = vsub.s32 0, %v216
    %v218 = vrot.slane %v213, %v217
    %220 = vmatprep.subr.bf16.mxu0 0
    %221 = vmatpush1.bf16.msra.mxu0 %v211
    %222 = vmatprep.subr.bf16.mxu0 0
    %223 = vmatpush1.bf16.msra.mxu0 0
    %224 = vmatprep.subr.bf16.mxu0 0
    %225 = vmatpush1.bf16.msra.mxu0 0
    %226 = vmatprep.subr.bf16.mxu0 0
    %227 = vmatpush1.bf16.msra.mxu0 0
    %228 = vmatprep.subr.bf16.mxu0 0
    %229 = vmatpush1.bf16.msra.mxu0 0
    %230 = vmatprep.subr.bf16.mxu0 0
    %231 = vmatpush1.bf16.msra.mxu0 0
    %232 = vmatprep.subr.bf16.mxu0 0
    %233 = vmatpush1.bf16.msra.mxu0 0
    %234 = vmatprep.subr.bf16.mxu0 0
    %235 = vmatpush1.bf16.msra.mxu0 0
    %236 = vmatprep.subr.bf16.mxu0 0
    %237 = vmatpush1.bf16.msra.mxu0 0
    %238 = vmatprep.subr.bf16.mxu0 0
    %239 = vmatpush1.bf16.msra.mxu0 0
    %240 = vmatprep.subr.bf16.mxu0 0
    %241 = vmatpush1.bf16.msra.mxu0 0
    %242 = vmatprep.subr.bf16.mxu0 0
    %243 = vmatpush1.bf16.msra.mxu0 0
    %244 = vmatprep.subr.bf16.mxu0 0
    %245 = vmatpush1.bf16.msra.mxu0 0
    %246 = vmatprep.subr.bf16.mxu0 0
    %247 = vmatpush1.bf16.msra.mxu0 0
    %248 = vmatprep.subr.bf16.mxu0 0
    %249 = vmatpush1.bf16.msra.mxu0 0
    %250 = vmatprep.subr.bf16.mxu0 0
    %251 = vmatpush1.bf16.msra.mxu0 0
    %252 = vmatprep.mubr.bf16.mxu0 0
    %253 = vmatmul.mubr.bf16.gmra.mrb[0].mxu0 %v104
    %v254 = vpop.f32.mrb[0].mxu0
    %v255 = vadd.f32 %v218, %v254
    %v256 = vpop.f32.mrb[0].mxu0
    %v257 = vpop.f32.mrb[0].mxu0
    %v258 = vadd.f32 %v218, %v257
    %v259 = vpop.f32.mrb[0].mxu0
    %260 = vdwg.mxu0
    %v261 = vmax.f32 %v255, 0.0
    %v262 = vmax.f32 %v258, 0.0
    %v263 = vpack.c.bf16 %v262, %v261
    %s264 = scalar_lea.vmem %s2, 32
    %v265 = vld [vmem:[%s264] sm:$0xf]
    %v266 = vld [vmem:[%s264 + $0x4] sm:$0xf]
    %v267 = vld [vmem:[%s264 + $0x8] sm:$0xf]
    %v268 = vld [vmem:[%s264 + $0xc] sm:$0xf]
    %v273 = vunpack.c.l.b16 %v265
    %v274 = vunpack.c.l.b16 %v266
    %v275 = vunpack.c.l.b16 %v267
    %v276 = vunpack.c.l.b16 %v268
    %v277 = vpack.c.b16 %v274, %v273
    %v278 = vpack.c.b16 %v276, %v275
    %v282 = vsel %vm44, %v263, 0
    %284 = vmatprep.subr.bf16.mxu0 0
    %285 = vmatpush1.bf16.msra.mxu0 %v277
    %286 = vmatprep.subr.bf16.mxu0 0
    %287 = vmatpush1.bf16.msra.mxu0 %v278
    %288 = vmatprep.subr.bf16.mxu0 0
    %289 = vmatpush1.bf16.msra.mxu0 0
    %290 = vmatprep.subr.bf16.mxu0 0
    %291 = vmatpush1.bf16.msra.mxu0 0
    %292 = vmatprep.subr.bf16.mxu0 0
    %293 = vmatpush1.bf16.msra.mxu0 0
    %294 = vmatprep.subr.bf16.mxu0 0
    %295 = vmatpush1.bf16.msra.mxu0 0
    %296 = vmatprep.subr.bf16.mxu0 0
    %297 = vmatpush1.bf16.msra.mxu0 0
    %298 = vmatprep.subr.bf16.mxu0 0
    %299 = vmatpush1.bf16.msra.mxu0 0
    %300 = vmatprep.subr.bf16.mxu0 0
    %301 = vmatpush1.bf16.msra.mxu0 0
    %302 = vmatprep.subr.bf16.mxu0 0
    %303 = vmatpush1.bf16.msra.mxu0 0
    %304 = vmatprep.subr.bf16.mxu0 0
    %305 = vmatpush1.bf16.msra.mxu0 0
    %306 = vmatprep.subr.bf16.mxu0 0
    %307 = vmatpush1.bf16.msra.mxu0 0
    %308 = vmatprep.subr.bf16.mxu0 0
    %309 = vmatpush1.bf16.msra.mxu0 0
    %310 = vmatprep.subr.bf16.mxu0 0
    %311 = vmatpush1.bf16.msra.mxu0 0
    %312 = vmatprep.subr.bf16.mxu0 0
    %313 = vmatpush1.bf16.msra.mxu0 0
    %314 = vmatprep.subr.bf16.mxu0 0
    %315 = vmatpush1.bf16.msra.mxu0 0
    %316 = vmatprep.mubr.bf16.mxu0 0
    %317 = vmatmul.mubr.bf16.gmra.mrb[0].mxu0 %v282
    %v318 = vpop.f32.mrb[0].mxu0
    %v319 = vadd.f32 0.0, %v318
    %v320 = vpop.f32.mrb[0].mxu0
    %v321 = vpop.f32.mrb[0].mxu0
    %v322 = vadd.f32 0.0, %v321
    %v323 = vpop.f32.mrb[0].mxu0
    %324 = vdwg.mxu0
    %v325 = vpack.c.bf16 %v322, %v319
    %s326 = scalar_lea.vmem %s3, 2
    %v327 = vld [vmem:[%s326] sm:$0x1]
    %v329 = vlaneseq
    %v330 = vshrl.u32 %v329, 7
    %v331 = vsub.s32 0, %v330
    %v332 = vrot.slane %v327, %v331
    %334 = vmatprep.subr.bf16.mxu0 0
    %335 = vmatpush1.bf16.msra.mxu0 %v325
    %336 = vmatprep.subr.bf16.mxu0 0
    %337 = vmatpush1.bf16.msra.mxu0 0
    %338 = vmatprep.subr.bf16.mxu0 0
    %339 = vmatpush1.bf16.msra.mxu0 0
    %340 = vmatprep.subr.bf16.mxu0 0
    %341 = vmatpush1.bf16.msra.mxu0 0
    %342 = vmatprep.subr.bf16.mxu0 0
    %343 = vmatpush1.bf16.msra.mxu0 0
    %344 = vmatprep.subr.bf16.mxu0 0
    %345 = vmatpush1.bf16.msra.mxu0 0
    %346 = vmatprep.subr.bf16.mxu0 0
    %347 = vmatpush1.bf16.msra.mxu0 0
    %348 = vmatprep.subr.bf16.mxu0 0
    %349 = vmatpush1.bf16.msra.mxu0 0
    %350 = vmatprep.subr.bf16.mxu0 0
    %351 = vmatpush1.bf16.msra.mxu0 0
    %352 = vmatprep.subr.bf16.mxu0 0
    %353 = vmatpush1.bf16.msra.mxu0 0
    %354 = vmatprep.subr.bf16.mxu0 0
    %355 = vmatpush1.bf16.msra.mxu0 0
    %356 = vmatprep.subr.bf16.mxu0 0
    %357 = vmatpush1.bf16.msra.mxu0 0
    %358 = vmatprep.subr.bf16.mxu0 0
    %359 = vmatpush1.bf16.msra.mxu0 0
    %360 = vmatprep.subr.bf16.mxu0 0
    %361 = vmatpush1.bf16.msra.mxu0 0
    %362 = vmatprep.subr.bf16.mxu0 0
    %363 = vmatpush1.bf16.msra.mxu0 0
    %364 = vmatprep.subr.bf16.mxu0 0
    %365 = vmatpush1.bf16.msra.mxu0 0
    %366 = vmatprep.mubr.bf16.mxu0 0
    %367 = vmatmul.mubr.bf16.gmra.mrb[0].mxu0 %v104
    %v368 = vpop.f32.mrb[0].mxu0
    %v369 = vadd.f32 %v332, %v368
    %v370 = vpop.f32.mrb[0].mxu0
    %v371 = vpop.f32.mrb[0].mxu0
    %v372 = vadd.f32 %v332, %v371
    %v373 = vpop.f32.mrb[0].mxu0
    %374 = vdwg.mxu0
    %v375 = vand.u32 2147483647, %v369
    %v376 = vand.u32 2147483647, %v372
    %v377 = vsel %vm102, %v375, 0.0
    %378 = vadd.xlane.f32.xlu0 %v377
    %v379 = vpop.xlane.xlu0 %378
    %v380 = vsel %vm102, %v376, 0.0
    %381 = vadd.xlane.f32.xlu0 %v380
    %v382 = vpop.xlane.xlu0 %381
    %v383 = vmax.f32 %v379, 1e-12
    %v384 = vmax.f32 %v382, 1e-12
    %v385 = vrcp.pop %v383
    %v386 = vrcp.pop %v384
    %v387 = vmul.f32 %v369, %v385
    %v388 = vmul.f32 %v372, %v386
    %389 = vst.msk [vmem:[#allocation2] sm:$0xff] %vm102, %v387
    %390 = vst.msk [vmem:[#allocation2 + $0x8] sm:$0xff] %vm102, %v388
    // Predicated region
    $region18: #{encoder_forward.1} parent=1 // pred_check
      _
    $region19: #{encoder_forward.1} parent=1 // pred_check_branch
      %392 = sbr.rel (0) target = $region21
    $region20: #{encoder_forward.1} parent=1 // pred_region
      %s394 = ssub.s32 256, 256
      %395 = vsyncadd [#allocation3], %s394
      %s396 = sshll.u32 [#allocation2], 4
      %s397 = int_to_ptr.vmem [resolvable:$true] %s396
      %402 = dma.vmem_to_hbm [thread:$0]  %s397, 256, %s4, [#allocation3], 128, 128, 8
    $region21: #{encoder_forward.1} parent=1 // pred_fallthru
      _
    // Predicated region
    $region22: #{encoder_forward.1} parent=1 // pred_check
      _
    $region23: #{encoder_forward.1} parent=1 // pred_check_branch
      %404 = sbr.rel (0) target = $region25
    $region24: #{encoder_forward.1} parent=1 // pred_region
      %405 = dma.done [#allocation3], 256
    $region25: #{encoder_forward.1} parent=1 // pred_fallthru
      _
    %406 = vsyncpa [#allocation3], 1

</llo_original>
